<compile_context>
chip_gen: v5e
topology: v5e:2x2
jax: 0.10.0
libtpu: 0.0.40
codegen_flags: <defaults>
</compile_context>

<pallas_src>
import functools

import jax
import jax.numpy as jnp
from jax.experimental import pallas as pl
from jax.experimental.pallas import tpu as pltpu


def _triplet_rowloss_kernel(a_ref, p_ref, n_ref, o_ref, *, margin):
    a = a_ref[...].astype(jnp.float32)
    p = p_ref[...].astype(jnp.float32)
    n = n_ref[...].astype(jnp.float32)

    # Fused feature-dim reduction: one XLU pass instead of two.
    dp = (a - p) * (a - p)
    dn = (a - n) * (a - n)
    row = jnp.sum(dp - dn, axis=1, keepdims=True)             # (TB, 1)

    # relu(d_pos - d_neg + margin), per row.  Rows of the padded last tile
    # beyond the true batch are simply never written back by Pallas (masked
    # partial-block writeback), so no explicit masking is required here.
    o_ref[...] = jnp.maximum(row + jnp.float32(margin), 0.0)


def _pick_batch_tile(B, D, itemsize):
    """Batch tile so 3 inputs x 2 pipeline buffers x (TB, D) stays ~12 MiB."""
    budget = 12 * 1024 * 1024
    tb = budget // (6 * D * max(int(itemsize), 1))
    tb = max(8, min(int(tb), 2048))
    tb = (tb // 8) * 8            # sublane-aligned
    if tb >= B:
        return B                  # single full-extent block
    return tb


def triplet_loss(anchor, positive, negative, *, margin, size_average=True,
                 tile_b=None):
    """Pallas-backed TripletLoss forward. Returns a scalar float32."""
    assert anchor.shape == positive.shape == negative.shape
    assert anchor.ndim == 2, "expected (B, D) embeddings"
    B, D = anchor.shape
    itemsize = jnp.dtype(anchor.dtype).itemsize

    if tile_b is None:
        tb = _pick_batch_tile(B, D, itemsize)
    else:
        tb = min(int(tile_b), B)
        if tb < B:
            tb = max(8, (tb // 8) * 8)
    grid = pl.cdiv(B, tb)

    kernel = functools.partial(_triplet_rowloss_kernel, margin=float(margin))

    cost = pl.CostEstimate(
        flops=7 * B * D + 3 * B,
        transcendentals=0,
        bytes_accessed=3 * B * D * int(itemsize) + B * 4,
    )

    losses = pl.pallas_call(
        kernel,
        out_shape=jax.ShapeDtypeStruct((B, 1), jnp.float32),
        grid_spec=pl.GridSpec(
            grid=(grid,),
            in_specs=[
                pl.BlockSpec((tb, D), lambda i: (i, 0)),
                pl.BlockSpec((tb, D), lambda i: (i, 0)),
                pl.BlockSpec((tb, D), lambda i: (i, 0)),
            ],
            out_specs=pl.BlockSpec((tb, 1), lambda i: (i, 0)),
        ),
        compiler_params=pltpu.CompilerParams(
            dimension_semantics=("parallel",),
            vmem_limit_bytes=32 * 1024 * 1024,
        ),
        cost_estimate=cost,
    )(anchor, positive, negative)

    total = jnp.sum(losses)
    if size_average:
        return total / jnp.float32(B)
    return total


def triplet_loss_ref(anchor, positive, negative, *, margin, size_average=True):
    """Plain-JAX reference mirroring the PyTorch module."""
    dp = jnp.sum((anchor - positive) ** 2, axis=1)
    dn = jnp.sum((anchor - negative) ** 2, axis=1)
    losses = jax.nn.relu(dp - dn + margin)
    return jnp.mean(losses) if size_average else jnp.sum(losses)


if __name__ == "__main__":
    key = jax.random.PRNGKey(0)
    k_a, k_p, k_n, k_rest = jax.random.split(key, 4)

    # Case 1: small embeddings (single full-extent tile), both reduction modes.
    B, D = 8, 32
    margin = 1.0
    anchor = jax.random.normal(k_a, (B, D), dtype=jnp.float32)
    positive = jax.random.normal(k_p, (B, D), dtype=jnp.float32)
    negative = jax.random.normal(k_n, (B, D), dtype=jnp.float32)

    out = jax.block_until_ready(
        triplet_loss(anchor, positive, negative, margin=margin,
                     size_average=True)
    )
    ref = triplet_loss_ref(anchor, positive, negative, margin=margin,
                           size_average=True)
    assert jnp.allclose(out, ref, rtol=1e-5, atol=1e-5), (out, ref)

    out_sum = jax.block_until_ready(
        triplet_loss(anchor, positive, negative, margin=margin,
                     size_average=False)
    )
    ref_sum = triplet_loss_ref(anchor, positive, negative, margin=margin,
                               size_average=False)
    assert jnp.allclose(out_sum, ref_sum, rtol=1e-5, atol=1e-5), (out_sum,
                                                                  ref_sum)

    # Case 2: multi-tile grid with a partially-filled (masked-writeback) last
    # tile.
    B2, D2 = 200, 128
    k_a2, k_p2, k_n2 = jax.random.split(k_rest, 3)
    a2 = jax.random.normal(k_a2, (B2, D2), dtype=jnp.float32)
    p2 = jax.random.normal(k_p2, (B2, D2), dtype=jnp.float32)
    n2 = jax.random.normal(k_n2, (B2, D2), dtype=jnp.float32)

    out2 = jax.block_until_ready(
        triplet_loss(a2, p2, n2, margin=0.5, size_average=True, tile_b=64)
    )
    ref2 = triplet_loss_ref(a2, p2, n2, margin=0.5, size_average=True)
    assert jnp.allclose(out2, ref2, rtol=1e-4, atol=1e-4), (out2, ref2)

    out2_sum = jax.block_until_ready(
        triplet_loss(a2, p2, n2, margin=0.5, size_average=False, tile_b=64)
    )
    ref2_sum = triplet_loss_ref(a2, p2, n2, margin=0.5, size_average=False)
    assert jnp.allclose(out2_sum, ref2_sum, rtol=1e-4, atol=1e-4), (out2_sum,
                                                                    ref2_sum)

    print("KERNEL_OK")
</pallas_src>

<mosaic_0001>
module attributes {stable_mosaic.version = 11 : i64} {
  func.func @_triplet_rowloss_kernel(%arg0: i32, %arg1: memref<8x32xf32, #tpu.memory_space<vmem>>, %arg2: memref<8x32xf32, #tpu.memory_space<vmem>>, %arg3: memref<8x32xf32, #tpu.memory_space<vmem>>, %arg4: memref<8x1xf32, #tpu.memory_space<vmem>>) attributes {dimension_semantics = [#tpu.dimension_semantics<parallel>], iteration_bounds = array<i64: 1>, scalar_prefetch = 0 : i64, scratch_operands = 0 : i64, tpu.core_type = #tpu.core_type<tc>, window_params = [{transform_indices = @transform_0, window_bounds = array<i64: 8, 32>}, {transform_indices = @transform_1, window_bounds = array<i64: 8, 32>}, {transform_indices = @transform_2, window_bounds = array<i64: 8, 32>}, {transform_indices = @transform_3, window_bounds = array<i64: 8, 1>}]} {
    %c0 = arith.constant 0 : index
    %c0_0 = arith.constant 0 : index
    %0 = vector.load %arg1[%c0, %c0_0] : memref<8x32xf32, #tpu.memory_space<vmem>>, vector<8x32xf32>
    %c0_1 = arith.constant 0 : index
    %c0_2 = arith.constant 0 : index
    %1 = vector.load %arg2[%c0_1, %c0_2] : memref<8x32xf32, #tpu.memory_space<vmem>>, vector<8x32xf32>
    %c0_3 = arith.constant 0 : index
    %c0_4 = arith.constant 0 : index
    %2 = vector.load %arg3[%c0_3, %c0_4] : memref<8x32xf32, #tpu.memory_space<vmem>>, vector<8x32xf32>
    %3 = arith.subf %0, %1 : vector<8x32xf32>
    %4 = arith.subf %0, %1 : vector<8x32xf32>
    %5 = arith.mulf %3, %4 : vector<8x32xf32>
    %6 = arith.subf %0, %2 : vector<8x32xf32>
    %7 = arith.subf %0, %2 : vector<8x32xf32>
    %8 = arith.mulf %6, %7 : vector<8x32xf32>
    %9 = arith.subf %5, %8 : vector<8x32xf32>
    %cst = arith.constant dense<0.000000e+00> : vector<8xf32>
    %10 = vector.multi_reduction <add>, %9, %cst [1] : vector<8x32xf32> to vector<8xf32>
    %11 = vector.shape_cast %10 : vector<8xf32> to vector<8x1xf32>
    %cst_5 = arith.constant 1.000000e+00 : f32
    %12 = vector.broadcast %cst_5 : f32 to vector<8x1xf32>
    %13 = arith.addf %11, %12 : vector<8x1xf32>
    %cst_6 = arith.constant 0.000000e+00 : f32
    %14 = vector.broadcast %cst_6 : f32 to vector<8x1xf32>
    %15 = arith.maximumf %13, %14 : vector<8x1xf32>
    %c0_7 = arith.constant 0 : index
    %c0_8 = arith.constant 0 : index
    %16 = vector.load %arg4[%c0_7, %c0_8] : memref<8x1xf32, #tpu.memory_space<vmem>>, vector<8x1xf32>
    tpu.vector_store %arg4[%c0_7, %c0_8], %15 {strides = array<i32>} : memref<8x1xf32, #tpu.memory_space<vmem>>, vector<8x1xf32>,
    return
  }
  func.func @transform_0(%arg0: i32) -> (i32, i32) {
    %c0_i32 = arith.constant 0 : i32
    %c0_i32_0 = arith.constant 0 : i32
    return %arg0, %c0_i32 : i32, i32
  }
  func.func @transform_1(%arg0: i32) -> (i32, i32) {
    %c0_i32 = arith.constant 0 : i32
    %c0_i32_0 = arith.constant 0 : i32
    return %arg0, %c0_i32 : i32, i32
  }
  func.func @transform_2(%arg0: i32) -> (i32, i32) {
    %c0_i32 = arith.constant 0 : i32
    %c0_i32_0 = arith.constant 0 : i32
    return %arg0, %c0_i32 : i32, i32
  }
  func.func @transform_3(%arg0: i32) -> (i32, i32) {
    %c0_i32 = arith.constant 0 : i32
    %c0_i32_0 = arith.constant 0 : i32
    return %arg0, %c0_i32 : i32, i32
  }
}

</mosaic_0001>

<llo_original>
// kernel: tpu_custom_call.1
$region0: #{tpu_custom_call.1}
  #allocation0 [shape = 'u32[]', space=smem, size = 0x4, offset = 0x4, fixed_abs, tag = 'smem constant byte address 0x4 - core index']
  #allocation1 [shape = 'u32[72,128]{1,0:T(1,128)}', space=vmem, size = 0x9000, scoped, tag = 'internal scratch']
  %s0 = inlined_call_operand.hbm [shape: f32[8,32], index: 0, kind: input, shape index: {}]
  %s1 = inlined_call_operand.hbm [shape: f32[8,32], index: 1, kind: input, shape index: {}]
  %s2 = inlined_call_operand.hbm [shape: f32[8,32], index: 2, kind: input, shape index: {}]
  %s3 = inlined_call_operand.vmem [shape: f32[8,1], index: 3, kind: output, shape index: {}]
  %s4 = sld [smem:[#allocation0]]
  $region34: #{tpu_custom_call.1} parent=0
    _
  %s6 = ssub.s32 1, %s4
  %s7 = scalar_select 0, %s6, %s4
  $region1: #{tpu_custom_call.1} parent=0
    #allocation2 [shape = 'u8[4096]{0}', space=vmem, size = 0x1000, scoped, tag = 'input window, operand 0, single buffered']
    #allocation3 [shape = 's32[1]{0}', space=sflag, size = 0x4, scoped, tag = 'scoped memory for tpu_custom_call.1']
    #allocation4 [shape = 'u8[4096]{0}', space=vmem, size = 0x1000, scoped, tag = 'input window, operand 1, single buffered']
    #allocation5 [shape = 's32[1]{0}', space=sflag, size = 0x4, scoped, tag = 'scoped memory for tpu_custom_call.1']
    #allocation6 [shape = 'u8[4096]{0}', space=vmem, size = 0x1000, scoped, tag = 'input window, operand 2, single buffered']
    %8 = vsyncpa [#allocation3], 0
    %9 = vsyncpa [#allocation5], 0
    // Predicated region
    $region2: #{tpu_custom_call.1} parent=1 // pred_check
      _
    $region3: #{tpu_custom_call.1} parent=1 // pred_check_branch
      %11 = sbr.rel (0) target = $region5
    $region4: #{tpu_custom_call.1} parent=1 // pred_region
      %13 = vsyncadd [#allocation3], 0
      %s15 = sshll.u32 %s0, 4
      %s16 = int_to_ptr.hbm [resolvable:$true] %s15
      %s17 = sshll.u32 [#allocation2], 4
      %s18 = int_to_ptr.vmem [resolvable:$true] %s17
      %20 = dma.hbm_to_vmem [thread:$0]  %s16, 128, %s18, [#allocation3]
    $region5: #{tpu_custom_call.1} parent=1 // pred_fallthru
      _
    // Predicated region
    $region6: #{tpu_custom_call.1} parent=1 // pred_check
      _
    $region7: #{tpu_custom_call.1} parent=1 // pred_check_branch
      %22 = sbr.rel (0) target = $region9
    $region8: #{tpu_custom_call.1} parent=1 // pred_region
      %24 = vsyncadd [#allocation5], 0
      %s26 = sshll.u32 %s1, 4
      %s27 = int_to_ptr.hbm [resolvable:$true] %s26
      %s28 = sshll.u32 [#allocation4], 4
      %s29 = int_to_ptr.vmem [resolvable:$true] %s28
      %31 = dma.hbm_to_vmem [thread:$0]  %s27, 128, %s29, [#allocation5]
    $region9: #{tpu_custom_call.1} parent=1 // pred_fallthru
      _
    // Predicated region
    $region10: #{tpu_custom_call.1} parent=1 // pred_check
      _
    $region11: #{tpu_custom_call.1} parent=1 // pred_check_branch
      %33 = sbr.rel (0) target = $region13
    $region12: #{tpu_custom_call.1} parent=1 // pred_region
      %35 = vsyncadd [#allocation5], 0
      %s37 = sshll.u32 %s2, 4
      %s38 = int_to_ptr.hbm [resolvable:$true] %s37
      %s39 = sshll.u32 [#allocation6], 4
      %s40 = int_to_ptr.vmem [resolvable:$true] %s39
      %42 = dma.hbm_to_vmem [thread:$0]  %s38, 128, %s40, [#allocation5]
    $region13: #{tpu_custom_call.1} parent=1 // pred_fallthru
      _
    // Predicated region
    $region14: #{tpu_custom_call.1} parent=1 // pred_check
      _
    $region15: #{tpu_custom_call.1} parent=1 // pred_check_branch
      %44 = sbr.rel (0) target = $region17
    $region16: #{tpu_custom_call.1} parent=1 // pred_region
      %46 = dma.done [#allocation3], 128
    $region17: #{tpu_custom_call.1} parent=1 // pred_fallthru
      _
    // Predicated region
    $region18: #{tpu_custom_call.1} parent=1 // pred_check
      _
    $region19: #{tpu_custom_call.1} parent=1 // pred_check_branch
      %48 = sbr.rel (0) target = $region21
    $region20: #{tpu_custom_call.1} parent=1 // pred_region
      %50 = dma.done [#allocation5], 128
    $region21: #{tpu_custom_call.1} parent=1 // pred_fallthru
      _
    // Predicated region
    $region22: #{tpu_custom_call.1} parent=1 // pred_check
      _
    $region23: #{tpu_custom_call.1} parent=1 // pred_check_branch
      %52 = sbr.rel (0) target = $region25
    $region24: #{tpu_custom_call.1} parent=1 // pred_region
      %54 = dma.done [#allocation5], 128
    $region25: #{tpu_custom_call.1} parent=1 // pred_fallthru
      _
    %v55 = vld [vmem:[#allocation2] sm:$0xff]
    %v56 = vld [vmem:[#allocation4] sm:$0xff]
    %v57 = vld [vmem:[#allocation6] sm:$0xff]
    %v58 = vsub.f32 %v55, %v56
    %v59 = vmul.f32 %v58, %v58
    %v60 = vsub.f32 %v55, %v57
    %v61 = vmul.f32 %v60, %v60
    %v62 = vsub.f32 %v59, %v61
    %vm63 = vcmask 261120
    %v64 = vsel %vm63, %v62, 0.0
    %65 = vadd.xlane.f32.xlu0 %v64
    %v66 = vpop.xlane.xlu0 %65
    %v67 = vadd.f32 %v66, 1.0
    %v68 = vmax.f32 %v67, 0.0
    %vm69 = vcmask 7168
    %70 = vst.msk [vmem:[%s3] sm:$0xff] %vm69, %v68
    // Predicated region
    $region26: #{tpu_custom_call.1} parent=1 // pred_check
      _
    $region27: #{tpu_custom_call.1} parent=1 // pred_check_branch
      %72 = sbr.rel (0) target = $region29
    $region28: #{tpu_custom_call.1} parent=1 // pred_region
      _
    $region29: #{tpu_custom_call.1} parent=1 // pred_fallthru
      _
    // Predicated region
    $region30: #{tpu_custom_call.1} parent=1 // pred_check
      _
    $region31: #{tpu_custom_call.1} parent=1 // pred_check_branch
      %74 = sbr.rel (0) target = $region33
    $region32: #{tpu_custom_call.1} parent=1 // pred_region
      _
    $region33: #{tpu_custom_call.1} parent=1 // pred_fallthru
      _
    %75 = vsyncpa [#allocation3], 1
    %76 = vsyncpa [#allocation5], 1

</llo_original>
